<compile_context>
chip_gen: v6e
topology: v6e:2x2x1
jax: 0.10.0
libtpu: 0.0.40
codegen_flags: <defaults>
</compile_context>

<pallas_src>
import jax
import jax.numpy as jnp
import numpy as np
from jax import lax
from jax.experimental import pallas as pl
from jax.experimental.pallas import tpu as pltpu


def _round_up(n, m):
    return ((n + m - 1) // m) * m


def _make_icnn_kernel(layer_sizes_padded, tb, n_sub, mxu_dtype):
    """Kernel ref order: x, W_aug, U_sp_1..U_sp_{k-1}, out, pre_scratch."""
    tbs = tb // n_sub

    def kernel(x_ref, w_ref, *rest):
        u_refs = rest[:-2]
        out_ref = rest[-2]
        pre_ref = rest[-1]

        # One fused matmul covering every layer's (W @ x^T + b):
        #   (sum_Lp, D_aug) . (TB, D_aug)^T -> (sum_Lp, TB), batch on lanes.
        # Bias is the ones-column of x times the bias-column of W_aug.
        # Result goes straight to VMEM scratch so only the current layer's rows
        # ever occupy vregs during the serial U chain.
        pre_ref[...] = lax.dot_general(
            w_ref[...], x_ref[...],
            dimension_numbers=(((1,), (1,)), ((), ())),
            preferred_element_type=jnp.float32)

        l0 = layer_sizes_padded[0]
        # n_sub independent batch sub-tiles: layer i of sub-tile A interleaves
        # with layer i of sub-tile B, hiding MXU fill/drain latency of the
        # small-contraction U @ z matmuls.
        zs = [jnp.maximum(pre_ref[0:l0, s * tbs:(s + 1) * tbs], 0.0)
              for s in range(n_sub)]
        off = l0
        for i, u_ref in enumerate(u_refs):
            li = layer_sizes_padded[i + 1]
            u = u_ref[...]  # softplus already applied in the wrapper
            zs = [jnp.maximum(
                      pre_ref[off:off + li, s * tbs:(s + 1) * tbs]
                      + jnp.dot(u, zs[s].astype(mxu_dtype),
                                preferred_element_type=jnp.float32),
                      0.0)
                  for s in range(n_sub)]
            off += li

        for s in range(n_sub):
            out_ref[:, s * tbs:(s + 1) * tbs] = zs[s].astype(out_ref.dtype)

    return kernel


def icnn_forward(x, ws, bs, us, *, block_b=512, use_bf16=False):
    """x: (B, D) float32.  Returns z: (L_last, B) float32 (matches PyTorch output)."""
    num_layers = len(ws)
    assert len(bs) == num_layers and len(us) == num_layers - 1

    B, D = x.shape
    layer_sizes = [int(w.shape[0]) for w in ws]
    mxu_dtype = jnp.bfloat16 if use_bf16 else jnp.float32
    itemsize = 2 if use_bf16 else 4

    # ---- padded shapes --------------------------------------------------------
    D_aug = _round_up(D + 1, 128)                # +1 ones column folds bias in;
                                                 # 128-lane-dense contraction dim
    Lp = [_round_up(L, 8) for L in layer_sizes]  # 8-aligned per-layer rows
    sum_Lp = sum(Lp)
    L_last, L_last_p = layer_sizes[-1], Lp[-1]

    # Batch tile: multiple of 128 (lane-dense); prefer >=2 grid steps so v7x's
    # two TensorCores both get work whenever there is enough batch.
    TB = min(_round_up(max(block_b, 128), 128), _round_up(B, 128))
    B_p = _round_up(B, TB)
    if B_p // TB < 2 and B > 128:
        TB = max(128, _round_up((B + 1) // 2, 128))
        B_p = _round_up(B, TB)
    n_sub = 2 if TB % 256 == 0 else 1            # in-kernel batch sub-tiling

    # ---- parameter / input preparation (plain JAX, outside the kernel) --------
    # x stays (B, D)+ones column; no wrapper transpose, kernel contracts on dim 1.
    x_aug = jnp.zeros((B_p, D_aug), jnp.float32)
    x_aug = x_aug.at[:B, :D].set(x.astype(jnp.float32))
    x_aug = x_aug.at[:B, D].set(1.0)
    x_aug = x_aug.astype(mxu_dtype)

    # Stack all W (+ bias column at index D) into one (sum_Lp, D_aug) matrix,
    # zero-padding each layer's rows to its 8-aligned size.
    w_aug = jnp.zeros((sum_Lp, D_aug), jnp.float32)
    off = 0
    for L, Lpad, w, b in zip(layer_sizes, Lp, ws, bs):
        w_aug = w_aug.at[off:off + L, :D].set(w.astype(jnp.float32))
        w_aug = w_aug.at[off:off + L, D].set(b.reshape(-1).astype(jnp.float32))
        off += Lpad
    w_aug = w_aug.astype(mxu_dtype)

    # Hoist softplus(U) out of the kernel; zero-pad AFTER softplus so padded
    # rows/cols are exactly 0 and padded feature rows of z stay exactly 0.
    u_sp = []
    for i, u in enumerate(us):
        Li, Lprev = layer_sizes[i + 1], layer_sizes[i]
        up = jnp.zeros((Lp[i + 1], Lp[i]), jnp.float32)
        up = up.at[:Li, :Lprev].set(jax.nn.softplus(u.astype(jnp.float32)))
        u_sp.append(up.astype(mxu_dtype))

    # ---- pallas_call -----------------------------------------------------------
    grid = (B_p // TB,)

    def _resident(shape):
        # Grid-invariant operand: constant index_map + single buffer.
        return pl.BlockSpec(shape, lambda i: (0, 0), pipeline_mode=pl.Buffered(1))

    in_specs = [
        pl.BlockSpec((TB, D_aug), lambda i: (i, 0)),   # x: tiled over batch
        _resident((sum_Lp, D_aug)),                    # W_aug (+bias): resident
    ]
    in_specs += [_resident(u.shape) for u in u_sp]     # softplus(U): resident
    out_spec = pl.BlockSpec((L_last_p, TB), lambda i: (0, i))  # lane-dense output

    # Explicit VMEM budget: x/out double buffers + single-buffered params +
    # the pre scratch, with 2x headroom (floor at the 32 MiB default scope).
    vmem_need = (2 * TB * D_aug * itemsize            # x double buffer
                 + 2 * L_last_p * TB * 4              # out double buffer
                 + sum_Lp * D_aug * itemsize          # W_aug (single buffer)
                 + sum(int(u.size) for u in u_sp) * itemsize
                 + sum_Lp * TB * 4)                   # pre scratch
    vmem_limit = int(min(max(2 * vmem_need, 32 * 1024 * 1024), 128 * 1024 * 1024))

    # Cost hint for the XLA scheduler.
    flops = 2 * sum_Lp * D_aug * B_p
    for i in range(1, num_layers):
        flops += 2 * Lp[i] * Lp[i - 1] * B_p
    bytes_accessed = (int(x_aug.size) * itemsize
                      + int(w_aug.size) * itemsize
                      + sum(int(u.size) for u in u_sp) * itemsize
                      + L_last_p * B_p * 4)
    cost = pl.CostEstimate(flops=int(flops), transcendentals=0,
                           bytes_accessed=int(bytes_accessed))

    kernel = _make_icnn_kernel(Lp, TB, n_sub, mxu_dtype)
    out_padded = pl.pallas_call(
        kernel,
        out_shape=jax.ShapeDtypeStruct((L_last_p, B_p), jnp.float32),
        grid=grid,
        in_specs=in_specs,
        out_specs=out_spec,
        scratch_shapes=[pltpu.VMEM((sum_Lp, TB), jnp.float32)],
        compiler_params=pltpu.CompilerParams(
            dimension_semantics=("parallel",),
            vmem_limit_bytes=vmem_limit),
        cost_estimate=cost,
    )(x_aug, w_aug, *u_sp)

    # Strip padding (padded L rows are exact zeros; padded batch cols are junk).
    return out_padded[:L_last, :B]


def _xavier_normal(key, shape):
    # torch.nn.init.xavier_normal_ for a 2-D tensor (fan_out, fan_in) = shape
    fan_out, fan_in = shape
    std = float(np.sqrt(2.0 / (fan_in + fan_out)))
    return std * jax.random.normal(key, shape, dtype=jnp.float32)


def make_icnn_params(key, input_dim, layer_sizes):
    ws, bs, us = [], [], []
    prev = input_dim
    for i, L in enumerate(layer_sizes):
        key, kw, kb, ku = jax.random.split(key, 4)
        ws.append(_xavier_normal(kw, (L, input_dim)))
        bs.append(_xavier_normal(kb, (L, 1)))
        if i > 0:
            us.append(_xavier_normal(ku, (L, prev)))
        prev = L
    return ws, bs, us


def icnn_reference(x, ws, bs, us):
    """Pure-JAX reference mirroring the PyTorch forward."""
    x_t = jnp.transpose(x)
    z = jnp.maximum(ws[0] @ x_t + bs[0], 0.0)
    for i in range(len(us)):
        u = jax.nn.softplus(us[i])
        z = jnp.maximum(ws[i + 1] @ x_t + bs[i + 1] + u @ z, 0.0)
    return z


if __name__ == "__main__":
    key = jax.random.PRNGKey(0)

    # Case 1: tiny shapes (single grid step, single sub-tile).
    B, D = 8, 16
    layer_sizes = [32, 32, 16]
    kx, kp = jax.random.split(key)
    x = jax.random.normal(kx, (B, D), dtype=jnp.float32)
    ws, bs, us = make_icnn_params(kp, D, layer_sizes)

    out = jax.block_until_ready(icnn_forward(x, ws, bs, us))
    ref = icnn_reference(x, ws, bs, us)
    np.testing.assert_allclose(np.asarray(out), np.asarray(ref),
                               rtol=1e-4, atol=1e-4)

    # Case 2: batch large enough to exercise >=2 grid steps (v7x megacore) and
    # the in-kernel 2-way batch sub-tiling; also exercise the bf16 MXU path.
    B2 = 300
    kx2, _ = jax.random.split(kp)
    x2 = jax.random.normal(kx2, (B2, D), dtype=jnp.float32)
    ref2 = icnn_reference(x2, ws, bs, us)

    out2 = jax.block_until_ready(icnn_forward(x2, ws, bs, us))
    np.testing.assert_allclose(np.asarray(out2), np.asarray(ref2),
                               rtol=1e-4, atol=1e-4)

    out2_bf16 = jax.block_until_ready(icnn_forward(x2, ws, bs, us, use_bf16=True))
    np.testing.assert_allclose(np.asarray(out2_bf16), np.asarray(ref2),
                               rtol=5e-2, atol=5e-2)

    print("KERNEL_OK")
</pallas_src>

<mosaic_0001>
module attributes {stable_mosaic.version = 11 : i64} {
  func.func @kernel(%arg0: i32, %arg1: memref<128x128xf32, #tpu.memory_space<vmem>>, %arg2: memref<80x128xf32, #tpu.memory_space<vmem>>, %arg3: memref<32x32xf32, #tpu.memory_space<vmem>>, %arg4: memref<16x32xf32, #tpu.memory_space<vmem>>, %arg5: memref<16x128xf32, #tpu.memory_space<vmem>>, %arg6: memref<80x128xf32, #tpu.memory_space<vmem>>) attributes {dimension_semantics = [#tpu.dimension_semantics<parallel>], iteration_bounds = array<i64: 1>, scalar_prefetch = 0 : i64, scratch_operands = 1 : i64, tpu.core_type = #tpu.core_type<tc>, window_params = [{transform_indices = @transform_0, window_bounds = array<i64: 128, 128>}, {pipeline_mode = #tpu.pipeline_mode<synchronous>, transform_indices = @transform_1, window_bounds = array<i64: 80, 128>}, {pipeline_mode = #tpu.pipeline_mode<synchronous>, transform_indices = @transform_2, window_bounds = array<i64: 32, 32>}, {pipeline_mode = #tpu.pipeline_mode<synchronous>, transform_indices = @transform_3, window_bounds = array<i64: 16, 32>}, {transform_indices = @transform_4, window_bounds = array<i64: 16, 128>}]} {
    %c0 = arith.constant 0 : index
    %c0_0 = arith.constant 0 : index
    %0 = vector.load %arg2[%c0, %c0_0] : memref<80x128xf32, #tpu.memory_space<vmem>>, vector<80x128xf32>
    %c0_1 = arith.constant 0 : index
    %c0_2 = arith.constant 0 : index
    %1 = vector.load %arg1[%c0_1, %c0_2] : memref<128x128xf32, #tpu.memory_space<vmem>>, vector<128x128xf32>
    %cst = arith.constant dense<0.000000e+00> : vector<80x128xf32>
    %2 = tpu.matmul %0, %1, %cst {dimension_numbers = #tpu.dot_dimension_numbers<[1], [1], [0], [0], [0, 0, 1, 0], [], []>} : vector<80x128xf32>, vector<128x128xf32>, vector<80x128xf32> -> vector<80x128xf32>
    %c0_3 = arith.constant 0 : index
    %c0_4 = arith.constant 0 : index
    %3 = vector.load %arg6[%c0_3, %c0_4] : memref<80x128xf32, #tpu.memory_space<vmem>>, vector<80x128xf32>
    tpu.vector_store %arg6[%c0_3, %c0_4], %2 {strides = array<i32>} : memref<80x128xf32, #tpu.memory_space<vmem>>, vector<80x128xf32>,
    %c0_5 = arith.constant 0 : index
    %c0_6 = arith.constant 0 : index
    %4 = vector.load %arg6[%c0_5, %c0_6] : memref<80x128xf32, #tpu.memory_space<vmem>>, vector<32x128xf32>
    %cst_7 = arith.constant 0.000000e+00 : f32
    %5 = vector.broadcast %cst_7 : f32 to vector<32x128xf32>
    %6 = arith.maximumf %4, %5 : vector<32x128xf32>
    %c0_8 = arith.constant 0 : index
    %c0_9 = arith.constant 0 : index
    %7 = vector.load %arg3[%c0_8, %c0_9] : memref<32x32xf32, #tpu.memory_space<vmem>>, vector<32x32xf32>
    %c32 = arith.constant 32 : index
    %c0_10 = arith.constant 0 : index
    %8 = vector.load %arg6[%c32, %c0_10] : memref<80x128xf32, #tpu.memory_space<vmem>>, vector<32x128xf32>
    %cst_11 = arith.constant dense<0.000000e+00> : vector<32x128xf32>
    %9 = tpu.matmul %7, %6, %cst_11 {dimension_numbers = #tpu.dot_dimension_numbers<[1], [0], [0], [1], [0, 0, 1, 1], [], []>} : vector<32x32xf32>, vector<32x128xf32>, vector<32x128xf32> -> vector<32x128xf32>
    %10 = arith.addf %8, %9 : vector<32x128xf32>
    %cst_12 = arith.constant 0.000000e+00 : f32
    %11 = vector.broadcast %cst_12 : f32 to vector<32x128xf32>
    %12 = arith.maximumf %10, %11 : vector<32x128xf32>
    %c0_13 = arith.constant 0 : index
    %c0_14 = arith.constant 0 : index
    %13 = vector.load %arg4[%c0_13, %c0_14] : memref<16x32xf32, #tpu.memory_space<vmem>>, vector<16x32xf32>
    %c64 = arith.constant 64 : index
    %c0_15 = arith.constant 0 : index
    %14 = vector.load %arg6[%c64, %c0_15] : memref<80x128xf32, #tpu.memory_space<vmem>>, vector<16x128xf32>
    %cst_16 = arith.constant dense<0.000000e+00> : vector<16x128xf32>
    %15 = tpu.matmul %13, %12, %cst_16 {dimension_numbers = #tpu.dot_dimension_numbers<[1], [0], [0], [1], [0, 0, 1, 1], [], []>} : vector<16x32xf32>, vector<32x128xf32>, vector<16x128xf32> -> vector<16x128xf32>
    %16 = arith.addf %14, %15 : vector<16x128xf32>
    %cst_17 = arith.constant 0.000000e+00 : f32
    %17 = vector.broadcast %cst_17 : f32 to vector<16x128xf32>
    %18 = arith.maximumf %16, %17 : vector<16x128xf32>
    %c0_18 = arith.constant 0 : index
    %c0_19 = arith.constant 0 : index
    %19 = vector.load %arg5[%c0_18, %c0_19] : memref<16x128xf32, #tpu.memory_space<vmem>>, vector<16x128xf32>
    tpu.vector_store %arg5[%c0_18, %c0_19], %18 {strides = array<i32>} : memref<16x128xf32, #tpu.memory_space<vmem>>, vector<16x128xf32>,
    return
  }
  func.func @transform_0(%arg0: i32) -> (i32, i32) {
    %c0_i32 = arith.constant 0 : i32
    %c0_i32_0 = arith.constant 0 : i32
    return %arg0, %c0_i32 : i32, i32
  }
  func.func @transform_1(%arg0: i32) -> (i32, i32) {
    %c0_i32 = arith.constant 0 : i32
    %c0_i32_0 = arith.constant 0 : i32
    %c0_i32_1 = arith.constant 0 : i32
    return %c0_i32, %c0_i32_0 : i32, i32
  }
  func.func @transform_2(%arg0: i32) -> (i32, i32) {
    %c0_i32 = arith.constant 0 : i32
    %c0_i32_0 = arith.constant 0 : i32
    %c0_i32_1 = arith.constant 0 : i32
    return %c0_i32, %c0_i32_0 : i32, i32
  }
  func.func @transform_3(%arg0: i32) -> (i32, i32) {
    %c0_i32 = arith.constant 0 : i32
    %c0_i32_0 = arith.constant 0 : i32
    %c0_i32_1 = arith.constant 0 : i32
    return %c0_i32, %c0_i32_0 : i32, i32
  }
  func.func @transform_4(%arg0: i32) -> (i32, i32) {
    %c0_i32 = arith.constant 0 : i32
    %c0_i32_0 = arith.constant 0 : i32
    return %c0_i32, %arg0 : i32, i32
  }
}

</mosaic_0001>

<llo_original>
// kernel: tpu_custom_call.1
$region0: #{tpu_custom_call.1}
  #allocation0 [shape = 'u32[]', space=smem, size = 0x4, offset = 0x4, fixed_abs, tag = 'smem constant byte address 0x4 - core index']
  #allocation1 [shape = 'u32[144,128]{1,0:T(1,128)}', space=vmem, size = 0x12000, scoped, tag = 'internal scratch']
  #allocation2 [shape = 'f32[80,128]{1,0:T(8,128)}', space=vmem, size = 0xa000, scoped, tag = 'scratch operand']
  %s0 = inlined_call_operand.hbm [shape: f32[128,128], index: 0, kind: input, shape index: {}]
  %s1 = inlined_call_operand.hbm [shape: f32[80,128], index: 1, kind: input, shape index: {}]
  %s2 = inlined_call_operand.hbm [shape: f32[32,32], index: 2, kind: input, shape index: {}]
  %s3 = inlined_call_operand.hbm [shape: f32[16,32], index: 3, kind: input, shape index: {}]
  %s4 = inlined_call_operand.hbm [shape: f32[16,128], index: 4, kind: output, shape index: {}]
  %s5 = sld [smem:[#allocation0]]
  $region42: #{tpu_custom_call.1} parent=0
    _
  %s7 = ssub.s32 1, %s5
  %s8 = scalar_select 0, %s7, %s5
  $region1: #{tpu_custom_call.1} parent=0
    #allocation3 [shape = 'u8[65536]{0}', space=vmem, size = 0x10000, scoped, tag = 'input window, operand 0, single buffered']
    #allocation4 [shape = 's32[1]{0}', space=sflag, size = 0x4, scoped, tag = 'scoped memory for tpu_custom_call.1']
    #allocation5 [shape = 's32[1]{0}', space=sflag, size = 0x4, scoped, tag = 'scoped memory for tpu_custom_call.1']
    #allocation6 [shape = 'u8[40960]{0}', space=vmem, size = 0xa000, scoped, tag = 'input window, operand 1, single buffered']
    #allocation7 [shape = 's32[1]{0}', space=sflag, size = 0x4, scoped, tag = 'scoped memory for tpu_custom_call.1']
    #allocation8 [shape = 'u8[16384]{0}', space=vmem, size = 0x4000, scoped, tag = 'input window, operand 2, single buffered']
    #allocation9 [shape = 'u8[8192]{0}', space=vmem, size = 0x2000, scoped, tag = 'input window, operand 3, single buffered']
    #allocation10 [shape = 's32[1]{0}', space=sflag, size = 0x4, scoped, tag = 'scoped memory for tpu_custom_call.1']
    #allocation11 [shape = 'u8[8192]{0}', space=vmem, size = 0x2000, scoped, tag = 'output window, operand 0, single buffered']
    %9 = vsyncpa [#allocation4], 0
    %10 = vsyncpa [#allocation7], 0
    %11 = vsyncpa [#allocation10], 0
    %12 = vsyncpa [#allocation5], 0
    // Predicated region
    $region2: #{tpu_custom_call.1} parent=1 // pred_check
      _
    $region3: #{tpu_custom_call.1} parent=1 // pred_check_branch
      %14 = sbr.rel (0) target = $region5
    $region4: #{tpu_custom_call.1} parent=1 // pred_region
      %s16 = ssub.s32 2048, 2048
      %17 = vsyncadd [#allocation4], %s16
      %s18 = sshll.u32 [#allocation3], 4
      %s19 = int_to_ptr.vmem [resolvable:$true] %s18
      %24 = dma.hbm_to_vmem [thread:$0]  %s0, 2048, %s19, [#allocation4], 128, 128, 8
    $region5: #{tpu_custom_call.1} parent=1 // pred_fallthru
      _
    // Predicated region
    $region6: #{tpu_custom_call.1} parent=1 // pred_check
      _
    $region7: #{tpu_custom_call.1} parent=1 // pred_check_branch
      %26 = sbr.rel (0) target = $region9
    $region8: #{tpu_custom_call.1} parent=1 // pred_region
      %s28 = ssub.s32 1280, 1280
      %29 = vsyncadd [#allocation7], %s28
      %s30 = sshll.u32 [#allocation6], 4
      %s31 = int_to_ptr.vmem [resolvable:$true] %s30
      %36 = dma.hbm_to_vmem [thread:$0]  %s1, 1280, %s31, [#allocation7], 128, 128, 8
    $region9: #{tpu_custom_call.1} parent=1 // pred_fallthru
      _
    // Predicated region
    $region10: #{tpu_custom_call.1} parent=1 // pred_check
      _
    $region11: #{tpu_custom_call.1} parent=1 // pred_check_branch
      %38 = sbr.rel (0) target = $region13
    $region12: #{tpu_custom_call.1} parent=1 // pred_region
      %s40 = ssub.s32 512, 512
      %41 = vsyncadd [#allocation7], %s40
      %s42 = sshll.u32 [#allocation8], 4
      %s43 = int_to_ptr.vmem [resolvable:$true] %s42
      %48 = dma.hbm_to_vmem [thread:$0]  %s2, 512, %s43, [#allocation7], 128, 128, 8
    $region13: #{tpu_custom_call.1} parent=1 // pred_fallthru
      _
    // Predicated region
    $region14: #{tpu_custom_call.1} parent=1 // pred_check
      _
    $region15: #{tpu_custom_call.1} parent=1 // pred_check_branch
      %50 = sbr.rel (0) target = $region17
    $region16: #{tpu_custom_call.1} parent=1 // pred_region
      %s52 = ssub.s32 256, 256
      %53 = vsyncadd [#allocation10], %s52
      %s54 = sshll.u32 [#allocation9], 4
      %s55 = int_to_ptr.vmem [resolvable:$true] %s54
      %60 = dma.hbm_to_vmem [thread:$0]  %s3, 256, %s55, [#allocation10], 128, 128, 8
    $region17: #{tpu_custom_call.1} parent=1 // pred_fallthru
      _
    // Predicated region
    $region18: #{tpu_custom_call.1} parent=1 // pred_check
      _
    $region19: #{tpu_custom_call.1} parent=1 // pred_check_branch
      %62 = sbr.rel (0) target = $region21
    $region20: #{tpu_custom_call.1} parent=1 // pred_region
      %63 = dma.done [#allocation4], 2048
    $region21: #{tpu_custom_call.1} parent=1 // pred_fallthru
      _
    // Predicated region
    $region22: #{tpu_custom_call.1} parent=1 // pred_check
      _
    $region23: #{tpu_custom_call.1} parent=1 // pred_check_branch
      %65 = sbr.rel (0) target = $region25
    $region24: #{tpu_custom_call.1} parent=1 // pred_region
      %66 = dma.done [#allocation7], 1280
    $region25: #{tpu_custom_call.1} parent=1 // pred_fallthru
      _
    // Predicated region
    $region26: #{tpu_custom_call.1} parent=1 // pred_check
      _
    $region27: #{tpu_custom_call.1} parent=1 // pred_check_branch
      %68 = sbr.rel (0) target = $region29
    $region28: #{tpu_custom_call.1} parent=1 // pred_region
      %69 = dma.done [#allocation7], 512
    $region29: #{tpu_custom_call.1} parent=1 // pred_fallthru
      _
    // Predicated region
    $region30: #{tpu_custom_call.1} parent=1 // pred_check
      _
    $region31: #{tpu_custom_call.1} parent=1 // pred_check_branch
      %71 = sbr.rel (0) target = $region33
    $region32: #{tpu_custom_call.1} parent=1 // pred_region
      %72 = dma.done [#allocation10], 256
    $region33: #{tpu_custom_call.1} parent=1 // pred_fallthru
      _
    %v73 = vld [vmem:[#allocation6] sm:$0xff]
    %v74 = vld [vmem:[#allocation6 + $0x8] sm:$0xff]
    %v75 = vld [vmem:[#allocation6 + $0x10] sm:$0xff]
    %v76 = vld [vmem:[#allocation6 + $0x18] sm:$0xff]
    %v77 = vld [vmem:[#allocation6 + $0x20] sm:$0xff]
    %v78 = vld [vmem:[#allocation6 + $0x28] sm:$0xff]
    %v79 = vld [vmem:[#allocation6 + $0x30] sm:$0xff]
    %v80 = vld [vmem:[#allocation6 + $0x38] sm:$0xff]
    %v81 = vld [vmem:[#allocation6 + $0x40] sm:$0xff]
    %v82 = vld [vmem:[#allocation6 + $0x48] sm:$0xff]
    %v83 = vld [vmem:[#allocation3] sm:$0xff]
    %v84 = vld [vmem:[#allocation3 + $0x8] sm:$0xff]
    %v85 = vld [vmem:[#allocation3 + $0x10] sm:$0xff]
    %v86 = vld [vmem:[#allocation3 + $0x18] sm:$0xff]
    %v87 = vld [vmem:[#allocation3 + $0x20] sm:$0xff]
    %v88 = vld [vmem:[#allocation3 + $0x28] sm:$0xff]
    %v89 = vld [vmem:[#allocation3 + $0x30] sm:$0xff]
    %v90 = vld [vmem:[#allocation3 + $0x38] sm:$0xff]
    %v91 = vld [vmem:[#allocation3 + $0x40] sm:$0xff]
    %v92 = vld [vmem:[#allocation3 + $0x48] sm:$0xff]
    %v93 = vld [vmem:[#allocation3 + $0x50] sm:$0xff]
    %v94 = vld [vmem:[#allocation3 + $0x58] sm:$0xff]
    %v95 = vld [vmem:[#allocation3 + $0x60] sm:$0xff]
    %v96 = vld [vmem:[#allocation3 + $0x68] sm:$0xff]
    %v97 = vld [vmem:[#allocation3 + $0x70] sm:$0xff]
    %v98 = vld [vmem:[#allocation3 + $0x78] sm:$0xff]
    %99 = vmatprep.subr.mxu0 0.0
    %100 = vmatpush1.xpose.msra.mxu0 %v98
    %101 = vmatprep.subr.mxu0 0.0
    %102 = vmatpush1.xpose.msra.mxu0 %v97
    %103 = vmatprep.subr.mxu0 0.0
    %104 = vmatpush1.xpose.msra.mxu0 %v96
    %105 = vmatprep.subr.mxu0 0.0
    %106 = vmatpush1.xpose.msra.mxu0 %v95
    %107 = vmatprep.subr.mxu0 0.0
    %108 = vmatpush1.xpose.msra.mxu0 %v94
    %109 = vmatprep.subr.mxu0 0.0
    %110 = vmatpush1.xpose.msra.mxu0 %v93
    %111 = vmatprep.subr.mxu0 0.0
    %112 = vmatpush1.xpose.msra.mxu0 %v92
    %113 = vmatprep.subr.mxu0 0.0
    %114 = vmatpush1.xpose.msra.mxu0 %v91
    %115 = vmatprep.subr.mxu0 0.0
    %116 = vmatpush1.xpose.msra.mxu0 %v90
    %117 = vmatprep.subr.mxu0 0.0
    %118 = vmatpush1.xpose.msra.mxu0 %v89
    %119 = vmatprep.subr.mxu0 0.0
    %120 = vmatpush1.xpose.msra.mxu0 %v88
    %121 = vmatprep.subr.mxu0 0.0
    %122 = vmatpush1.xpose.msra.mxu0 %v87
    %123 = vmatprep.subr.mxu0 0.0
    %124 = vmatpush1.xpose.msra.mxu0 %v86
    %125 = vmatprep.subr.mxu0 0.0
    %126 = vmatpush1.xpose.msra.mxu0 %v85
    %127 = vmatprep.subr.mxu0 0.0
    %128 = vmatpush1.xpose.msra.mxu0 %v84
    %129 = vmatprep.subr.mxu0 0.0
    %130 = vmatpush1.xpose.msra.mxu0 %v83
    %131 = vmatprep.subr.mxu0 0.0
    %132 = vmatpush2.xpose.msra.mxu0 0.0
    %133 = vmatprep.subr.mxu0 0.0
    %134 = vmatpush2.xpose.msra.mxu0 0.0
    %135 = vmatprep.subr.mxu0 0.0
    %136 = vmatpush2.xpose.msra.mxu0 0.0
    %137 = vmatprep.subr.mxu0 0.0
    %138 = vmatpush2.xpose.msra.mxu0 0.0
    %139 = vmatprep.subr.mxu0 0.0
    %140 = vmatpush2.xpose.msra.mxu0 0.0
    %141 = vmatprep.subr.mxu0 0.0
    %142 = vmatpush2.xpose.msra.mxu0 0.0
    %143 = vmatprep.subr.mxu0 0.0
    %144 = vmatpush2.xpose.msra.mxu0 0.0
    %145 = vmatprep.subr.mxu0 0.0
    %146 = vmatpush2.xpose.msra.mxu0 0.0
    %147 = vmatprep.subr.mxu0 0.0
    %148 = vmatpush2.xpose.msra.mxu0 0.0
    %149 = vmatprep.subr.mxu0 0.0
    %150 = vmatpush2.xpose.msra.mxu0 0.0
    %151 = vmatprep.subr.mxu0 0.0
    %152 = vmatpush2.xpose.msra.mxu0 0.0
    %153 = vmatprep.subr.mxu0 0.0
    %154 = vmatpush2.xpose.msra.mxu0 0.0
    %155 = vmatprep.subr.mxu0 0.0
    %156 = vmatpush2.xpose.msra.mxu0 0.0
    %157 = vmatprep.subr.mxu0 0.0
    %158 = vmatpush2.xpose.msra.mxu0 0.0
    %159 = vmatprep.subr.mxu0 0.0
    %160 = vmatpush2.xpose.msra.mxu0 0.0
    %161 = vmatprep.subr.mxu0 0.0
    %162 = vmatpush2.xpose.msra.mxu0 0.0
    %163 = vmatprep.mubr.f32.mxu0 0.0
    %164 = vmatmul.mubr.f32.gmra.mxu0 %v73
    %v165 = vpop.f32.mrf.mxu0
    %v166 = vadd.f32 0.0, %v165
    %v167 = vpop.f32.mrf.mxu0
    %168 = vmatprep.mubr.f32.mxu0 0.0
    %169 = vmatmul.mubr.f32.gmra.mxu0 %v74
    %v170 = vpop.f32.mrf.mxu0
    %v171 = vadd.f32 0.0, %v170
    %v172 = vpop.f32.mrf.mxu0
    %173 = vmatprep.mubr.f32.mxu0 0.0
    %174 = vmatmul.mubr.f32.gmra.mxu0 %v75
    %v175 = vpop.f32.mrf.mxu0
    %v176 = vadd.f32 0.0, %v175
    %v177 = vpop.f32.mrf.mxu0
    %178 = vmatprep.mubr.f32.mxu0 0.0
    %179 = vmatmul.mubr.f32.gmra.mxu0 %v76
    %v180 = vpop.f32.mrf.mxu0
    %v181 = vadd.f32 0.0, %v180
    %v182 = vpop.f32.mrf.mxu0
    %183 = vmatprep.mubr.f32.mxu0 0.0
    %184 = vmatmul.mubr.f32.gmra.mxu0 %v77
    %v185 = vpop.f32.mrf.mxu0
    %v186 = vadd.f32 0.0, %v185
    %v187 = vpop.f32.mrf.mxu0
    %188 = vmatprep.mubr.f32.mxu0 0.0
    %189 = vmatmul.mubr.f32.gmra.mxu0 %v78
    %v190 = vpop.f32.mrf.mxu0
    %v191 = vadd.f32 0.0, %v190
    %v192 = vpop.f32.mrf.mxu0
    %193 = vmatprep.mubr.f32.mxu0 0.0
    %194 = vmatmul.mubr.f32.gmra.mxu0 %v79
    %v195 = vpop.f32.mrf.mxu0
    %v196 = vadd.f32 0.0, %v195
    %v197 = vpop.f32.mrf.mxu0
    %198 = vmatprep.mubr.f32.mxu0 0.0
    %199 = vmatmul.mubr.f32.gmra.mxu0 %v80
    %v200 = vpop.f32.mrf.mxu0
    %v201 = vadd.f32 0.0, %v200
    %v202 = vpop.f32.mrf.mxu0
    %203 = vmatprep.mubr.f32.mxu0 0.0
    %204 = vmatmul.mubr.f32.gmra.mxu0 %v81
    %v205 = vpop.f32.mrf.mxu0
    %v206 = vadd.f32 0.0, %v205
    %v207 = vpop.f32.mrf.mxu0
    %208 = vmatprep.mubr.f32.mxu0 0.0
    %209 = vmatmul.mubr.f32.gmra.mxu0 %v82
    %v210 = vpop.f32.mrf.mxu0
    %v211 = vadd.f32 0.0, %v210
    %v212 = vpop.f32.mrf.mxu0
    %213 = vdwg.mxu0
    %214 = vst [vmem:[#allocation2] sm:$0xff] %v166
    %215 = vst [vmem:[#allocation2 + $0x8] sm:$0xff] %v171
    %216 = vst [vmem:[#allocation2 + $0x10] sm:$0xff] %v176
    %217 = vst [vmem:[#allocation2 + $0x18] sm:$0xff] %v181
    %218 = vst [vmem:[#allocation2 + $0x20] sm:$0xff] %v186
    %219 = vst [vmem:[#allocation2 + $0x28] sm:$0xff] %v191
    %220 = vst [vmem:[#allocation2 + $0x30] sm:$0xff] %v196
    %221 = vst [vmem:[#allocation2 + $0x38] sm:$0xff] %v201
    %222 = vst [vmem:[#allocation2 + $0x40] sm:$0xff] %v206
    %223 = vst [vmem:[#allocation2 + $0x48] sm:$0xff] %v211
    %v224 = vld [vmem:[#allocation2] sm:$0xff]
    %v225 = vld [vmem:[#allocation2 + $0x8] sm:$0xff]
    %v226 = vld [vmem:[#allocation2 + $0x10] sm:$0xff]
    %v227 = vld [vmem:[#allocation2 + $0x18] sm:$0xff]
    %v228 = vmax.f32 %v224, 0.0
    %v229 = vmax.f32 %v225, 0.0
    %v230 = vmax.f32 %v226, 0.0
    %v231 = vmax.f32 %v227, 0.0
    %v232 = vld [vmem:[#allocation8] sm:$0xff]
    %v233 = vld [vmem:[#allocation8 + $0x8] sm:$0xff]
    %v234 = vld [vmem:[#allocation8 + $0x10] sm:$0xff]
    %v235 = vld [vmem:[#allocation8 + $0x18] sm:$0xff]
    %v236 = vld [vmem:[#allocation2 + $0x20] sm:$0xff]
    %v237 = vld [vmem:[#allocation2 + $0x28] sm:$0xff]
    %v238 = vld [vmem:[#allocation2 + $0x30] sm:$0xff]
    %v239 = vld [vmem:[#allocation2 + $0x38] sm:$0xff]
    %vm240 = vcmask 261120
    %v242 = vsel %vm240, %v232, 0
    %v245 = vsel %vm240, %v233, 0
    %v248 = vsel %vm240, %v234, 0
    %v251 = vsel %vm240, %v235, 0
    %253 = vmatprep.subr.mxu0 0.0
    %254 = vmatpush1.msra.mxu0 0.0
    %255 = vmatprep.subr.mxu0 0.0
    %256 = vmatpush1.msra.mxu0 0.0
    %257 = vmatprep.subr.mxu0 0.0
    %258 = vmatpush1.msra.mxu0 0.0
    %259 = vmatprep.subr.mxu0 0.0
    %260 = vmatpush1.msra.mxu0 0.0
    %261 = vmatprep.subr.mxu0 0.0
    %262 = vmatpush1.msra.mxu0 0.0
    %263 = vmatprep.subr.mxu0 0.0
    %264 = vmatpush1.msra.mxu0 0.0
    %265 = vmatprep.subr.mxu0 0.0
    %266 = vmatpush1.msra.mxu0 0.0
    %267 = vmatprep.subr.mxu0 0.0
    %268 = vmatpush1.msra.mxu0 0.0
    %269 = vmatprep.subr.mxu0 0.0
    %270 = vmatpush1.msra.mxu0 0.0
    %271 = vmatprep.subr.mxu0 0.0
    %272 = vmatpush1.msra.mxu0 0.0
    %273 = vmatprep.subr.mxu0 0.0
    %274 = vmatpush1.msra.mxu0 0.0
    %275 = vmatprep.subr.mxu0 0.0
    %276 = vmatpush1.msra.mxu0 0.0
    %277 = vmatprep.subr.mxu0 0.0
    %278 = vmatpush1.msra.mxu0 %v231
    %279 = vmatprep.subr.mxu0 0.0
    %280 = vmatpush1.msra.mxu0 %v230
    %281 = vmatprep.subr.mxu0 0.0
    %282 = vmatpush1.msra.mxu0 %v229
    %283 = vmatprep.subr.mxu0 0.0
    %284 = vmatpush1.msra.mxu0 %v228
    %285 = vmatprep.subr.mxu0 0.0
    %286 = vmatpush2.msra.mxu0 0.0
    %287 = vmatprep.subr.mxu0 0.0
    %288 = vmatpush2.msra.mxu0 0.0
    %289 = vmatprep.subr.mxu0 0.0
    %290 = vmatpush2.msra.mxu0 0.0
    %291 = vmatprep.subr.mxu0 0.0
    %292 = vmatpush2.msra.mxu0 0.0
    %293 = vmatprep.subr.mxu0 0.0
    %294 = vmatpush2.msra.mxu0 0.0
    %295 = vmatprep.subr.mxu0 0.0
    %296 = vmatpush2.msra.mxu0 0.0
    %297 = vmatprep.subr.mxu0 0.0
    %298 = vmatpush2.msra.mxu0 0.0
    %299 = vmatprep.subr.mxu0 0.0
    %300 = vmatpush2.msra.mxu0 0.0
    %301 = vmatprep.subr.mxu0 0.0
    %302 = vmatpush2.msra.mxu0 0.0
    %303 = vmatprep.subr.mxu0 0.0
    %304 = vmatpush2.msra.mxu0 0.0
    %305 = vmatprep.subr.mxu0 0.0
    %306 = vmatpush2.msra.mxu0 0.0
    %307 = vmatprep.subr.mxu0 0.0
    %308 = vmatpush2.msra.mxu0 0.0
    %309 = vmatprep.subr.mxu0 0.0
    %310 = vmatpush2.msra.mxu0 0.0
    %311 = vmatprep.subr.mxu0 0.0
    %312 = vmatpush2.msra.mxu0 0.0
    %313 = vmatprep.subr.mxu0 0.0
    %314 = vmatpush2.msra.mxu0 0.0
    %315 = vmatprep.subr.mxu0 0.0
    %316 = vmatpush2.msra.mxu0 0.0
    %317 = vmatprep.mubr.f32.mxu0 0.0
    %318 = vmatmul.mubr.f32.gmra.mxu0 %v242
    %v319 = vpop.f32.mrf.mxu0
    %v320 = vadd.f32 0.0, %v319
    %v321 = vpop.f32.mrf.mxu0
    %322 = vmatprep.mubr.f32.mxu0 0.0
    %323 = vmatmul.mubr.f32.gmra.mxu0 %v245
    %v324 = vpop.f32.mrf.mxu0
    %v325 = vadd.f32 0.0, %v324
    %v326 = vpop.f32.mrf.mxu0
    %327 = vmatprep.mubr.f32.mxu0 0.0
    %328 = vmatmul.mubr.f32.gmra.mxu0 %v248
    %v329 = vpop.f32.mrf.mxu0
    %v330 = vadd.f32 0.0, %v329
    %v331 = vpop.f32.mrf.mxu0
    %332 = vmatprep.mubr.f32.mxu0 0.0
    %333 = vmatmul.mubr.f32.gmra.mxu0 %v251
    %v334 = vpop.f32.mrf.mxu0
    %v335 = vadd.f32 0.0, %v334
    %v336 = vpop.f32.mrf.mxu0
    %337 = vdwg.mxu0
    %v338 = vadd.f32 %v236, %v320
    %v339 = vadd.f32 %v237, %v325
    %v340 = vadd.f32 %v238, %v330
    %v341 = vadd.f32 %v239, %v335
    %v342 = vmax.f32 %v338, 0.0
    %v343 = vmax.f32 %v339, 0.0
    %v344 = vmax.f32 %v340, 0.0
    %v345 = vmax.f32 %v341, 0.0
    %v346 = vld [vmem:[#allocation9] sm:$0xff]
    %v347 = vld [vmem:[#allocation9 + $0x8] sm:$0xff]
    %v348 = vld [vmem:[#allocation2 + $0x40] sm:$0xff]
    %v349 = vld [vmem:[#allocation2 + $0x48] sm:$0xff]
    %v351 = vsel %vm240, %v346, 0
    %v354 = vsel %vm240, %v347, 0
    %356 = vmatprep.subr.mxu0 0.0
    %357 = vmatpush1.msra.mxu0 0.0
    %358 = vmatprep.subr.mxu0 0.0
    %359 = vmatpush1.msra.mxu0 0.0
    %360 = vmatprep.subr.mxu0 0.0
    %361 = vmatpush1.msra.mxu0 0.0
    %362 = vmatprep.subr.mxu0 0.0
    %363 = vmatpush1.msra.mxu0 0.0
    %364 = vmatprep.subr.mxu0 0.0
    %365 = vmatpush1.msra.mxu0 0.0
    %366 = vmatprep.subr.mxu0 0.0
    %367 = vmatpush1.msra.mxu0 0.0
    %368 = vmatprep.subr.mxu0 0.0
    %369 = vmatpush1.msra.mxu0 0.0
    %370 = vmatprep.subr.mxu0 0.0
    %371 = vmatpush1.msra.mxu0 0.0
    %372 = vmatprep.subr.mxu0 0.0
    %373 = vmatpush1.msra.mxu0 0.0
    %374 = vmatprep.subr.mxu0 0.0
    %375 = vmatpush1.msra.mxu0 0.0
    %376 = vmatprep.subr.mxu0 0.0
    %377 = vmatpush1.msra.mxu0 0.0
    %378 = vmatprep.subr.mxu0 0.0
    %379 = vmatpush1.msra.mxu0 0.0
    %380 = vmatprep.subr.mxu0 0.0
    %381 = vmatpush1.msra.mxu0 %v345
    %382 = vmatprep.subr.mxu0 0.0
    %383 = vmatpush1.msra.mxu0 %v344
    %384 = vmatprep.subr.mxu0 0.0
    %385 = vmatpush1.msra.mxu0 %v343
    %386 = vmatprep.subr.mxu0 0.0
    %387 = vmatpush1.msra.mxu0 %v342
    %388 = vmatprep.subr.mxu0 0.0
    %389 = vmatpush2.msra.mxu0 0.0
    %390 = vmatprep.subr.mxu0 0.0
    %391 = vmatpush2.msra.mxu0 0.0
    %392 = vmatprep.subr.mxu0 0.0
    %393 = vmatpush2.msra.mxu0 0.0
    %394 = vmatprep.subr.mxu0 0.0
    %395 = vmatpush2.msra.mxu0 0.0
    %396 = vmatprep.subr.mxu0 0.0
    %397 = vmatpush2.msra.mxu0 0.0
    %398 = vmatprep.subr.mxu0 0.0
    %399 = vmatpush2.msra.mxu0 0.0
    %400 = vmatprep.subr.mxu0 0.0
    %401 = vmatpush2.msra.mxu0 0.0
    %402 = vmatprep.subr.mxu0 0.0
    %403 = vmatpush2.msra.mxu0 0.0
    %404 = vmatprep.subr.mxu0 0.0
    %405 = vmatpush2.msra.mxu0 0.0
    %406 = vmatprep.subr.mxu0 0.0
    %407 = vmatpush2.msra.mxu0 0.0
    %408 = vmatprep.subr.mxu0 0.0
    %409 = vmatpush2.msra.mxu0 0.0
    %410 = vmatprep.subr.mxu0 0.0
    %411 = vmatpush2.msra.mxu0 0.0
    %412 = vmatprep.subr.mxu0 0.0
    %413 = vmatpush2.msra.mxu0 0.0
    %414 = vmatprep.subr.mxu0 0.0
    %415 = vmatpush2.msra.mxu0 0.0
    %416 = vmatprep.subr.mxu0 0.0
    %417 = vmatpush2.msra.mxu0 0.0
    %418 = vmatprep.subr.mxu0 0.0
    %419 = vmatpush2.msra.mxu0 0.0
    %420 = vmatprep.mubr.f32.mxu0 0.0
    %421 = vmatmul.mubr.f32.gmra.mxu0 %v351
    %v422 = vpop.f32.mrf.mxu0
    %v423 = vadd.f32 0.0, %v422
    %v424 = vpop.f32.mrf.mxu0
    %425 = vmatprep.mubr.f32.mxu0 0.0
    %426 = vmatmul.mubr.f32.gmra.mxu0 %v354
    %v427 = vpop.f32.mrf.mxu0
    %v428 = vadd.f32 0.0, %v427
    %v429 = vpop.f32.mrf.mxu0
    %430 = vdwg.mxu0
    %v431 = vadd.f32 %v348, %v423
    %v432 = vadd.f32 %v349, %v428
    %v433 = vmax.f32 %v431, 0.0
    %v434 = vmax.f32 %v432, 0.0
    %435 = vst [vmem:[#allocation11] sm:$0xff] %v433
    %436 = vst [vmem:[#allocation11 + $0x8] sm:$0xff] %v434
    // Predicated region
    $region34: #{tpu_custom_call.1} parent=1 // pred_check
      _
    $region35: #{tpu_custom_call.1} parent=1 // pred_check_branch
      %438 = sbr.rel (0) target = $region37
    $region36: #{tpu_custom_call.1} parent=1 // pred_region
      %s440 = ssub.s32 256, 256
      %441 = vsyncadd [#allocation5], %s440
      %s442 = sshll.u32 [#allocation11], 4
      %s443 = int_to_ptr.vmem [resolvable:$true] %s442
      %448 = dma.vmem_to_hbm [thread:$0]  %s443, 256, %s4, [#allocation5], 128, 128, 8
    $region37: #{tpu_custom_call.1} parent=1 // pred_fallthru
      _
    // Predicated region
    $region38: #{tpu_custom_call.1} parent=1 // pred_check
      _
    $region39: #{tpu_custom_call.1} parent=1 // pred_check_branch
      %450 = sbr.rel (0) target = $region41
    $region40: #{tpu_custom_call.1} parent=1 // pred_region
      %451 = dma.done [#allocation5], 256
    $region41: #{tpu_custom_call.1} parent=1 // pred_fallthru
      _
    %452 = vsyncpa [#allocation4], 1
    %453 = vsyncpa [#allocation7], 1
    %454 = vsyncpa [#allocation10], 1
    %455 = vsyncpa [#allocation5], 1

</llo_original>
